<compile_context>
chip_gen: v7x
topology: tpu7x:2x2x1
jax: 0.10.0
libtpu: 0.0.40
codegen_flags: <defaults>
</compile_context>

<pallas_src>
import functools

import jax
import jax.numpy as jnp
from jax import lax
from jax.experimental import pallas as pl
from jax.experimental.pallas import tpu as pltpu


def ngram_kernel(idx_ref, emb_hbm, w1_ref, b1_ref, w2_ref, b2_ref, out_ref,
                 rows_vmem, dma_sems, *, n, vocab):
    # --- Embedding gather: DMA only the N indexed rows HBM -> VMEM ----------
    copies = []
    for i in range(n):                                   # n is static & tiny
        tok = jnp.clip(idx_ref[i], 0, vocab - 1)         # clamp (jnp-gather parity)
        cp = pltpu.make_async_copy(
            emb_hbm.at[pl.ds(tok, 1), :],                # (1, V) row in HBM
            rows_vmem.at[pl.ds(i, 1), :],                # (1, V) scratch row
            dma_sems.at[i])
        cp.start()
        copies.append(cp)
    for cp in copies:
        cp.wait()

    # --- linear1: b1 + sum_i rows[i] @ W1[:, i*V:(i+1)*V].T  (== flat @ W1.T)
    acc = b1_ref[...].astype(jnp.float32)                # (1, D)
    for i in range(n):
        row = rows_vmem[pl.ds(i, 1), :]                  # (1, V)
        w1_blk = w1_ref[:, pl.ds(i * vocab, vocab)]      # (D, V) static lane slice
        acc = acc + lax.dot_general(                     # x @ W.T on the MXU
            row, w1_blk,
            dimension_numbers=(((1,), (1,)), ((), ())),
            preferred_element_type=jnp.float32)          # (1, D)
    h = jnp.maximum(acc, 0.0)                            # relu

    # --- linear2: h @ W2.T + b2 ---------------------------------------------
    out = lax.dot_general(
        h, w2_ref[...],
        dimension_numbers=(((1,), (1,)), ((), ())),
        preferred_element_type=jnp.float32) + b2_ref[...]
    out_ref[...] = out.astype(out_ref.dtype)             # (1, V)


def ngram_forward(idx, emb, w1, b1, w2, b2):
    """idx:(N,) int32, emb:(V,V) f32, w1:(D, N*V), b1:(D,), w2:(V, D), b2:(V,)."""
    vocab = emb.shape[0]
    n = idx.shape[0]
    d = w1.shape[0]
    assert w1.shape == (d, n * vocab) and w2.shape == (vocab, d)

    kernel = functools.partial(ngram_kernel, n=n, vocab=vocab)

    flops = 2 * (n * vocab * d + d * vocab)
    bytes_accessed = 4 * (d * n * vocab + vocab * d + d + vocab   # weights + biases
                          + n * vocab                              # gathered emb rows
                          + vocab + n)                             # output + idx

    return pl.pallas_call(
        kernel,
        out_shape=jax.ShapeDtypeStruct((1, vocab), jnp.float32),
        in_specs=[
            pl.BlockSpec(memory_space=pltpu.MemorySpace.SMEM),   # idx scalars
            pl.BlockSpec(memory_space=pl.ANY),                   # emb stays in HBM
            pl.BlockSpec(memory_space=pltpu.MemorySpace.VMEM),   # w1 (D, N*V)
            pl.BlockSpec(memory_space=pltpu.MemorySpace.VMEM),   # b1 (1, D)
            pl.BlockSpec(memory_space=pltpu.MemorySpace.VMEM),   # w2 (V, D)
            pl.BlockSpec(memory_space=pltpu.MemorySpace.VMEM),   # b2 (1, V)
        ],
        out_specs=pl.BlockSpec(memory_space=pltpu.MemorySpace.VMEM),
        scratch_shapes=[
            pltpu.VMEM((n, vocab), jnp.float32),     # gathered embedding rows
            pltpu.SemaphoreType.DMA((n,)),           # one DMA sem per row
        ],
        cost_estimate=pl.CostEstimate(flops=flops, transcendentals=0,
                                      bytes_accessed=bytes_accessed),
    )(idx, emb, w1, b1.reshape(1, d), w2, b2.reshape(1, vocab))


def ngram_reference(idx, emb, w1, b1, w2, b2):
    """Pure-JAX reference matching the PyTorch forward exactly."""
    embed = emb[idx].reshape(1, -1)                               # (1, N*V)
    h = jnp.maximum(embed @ w1.T + b1[None, :], 0.0)              # (1, D)
    return h @ w2.T + b2[None, :]                                 # (1, V)


if __name__ == "__main__":
    VOCAB = 128       # vocab_size (== embedding_dim per the module)
    OUT_DIM = 128     # output_dim of linear1
    N = 2             # n-gram context length

    key = jax.random.PRNGKey(0)
    k_emb, k_w1, k_b1, k_w2, k_b2, k_idx = jax.random.split(key, 6)

    emb = jax.random.normal(k_emb, (VOCAB, VOCAB), dtype=jnp.float32)
    w1 = jax.random.normal(k_w1, (OUT_DIM, VOCAB * N), dtype=jnp.float32) * 0.05
    b1 = jax.random.normal(k_b1, (OUT_DIM,), dtype=jnp.float32) * 0.05
    w2 = jax.random.normal(k_w2, (VOCAB, OUT_DIM), dtype=jnp.float32) * 0.05
    b2 = jax.random.normal(k_b2, (VOCAB,), dtype=jnp.float32) * 0.05

    idx = jax.random.randint(k_idx, (N,), 0, VOCAB, dtype=jnp.int32)

    out = ngram_forward(idx, emb, w1, b1, w2, b2)
    out = jax.block_until_ready(out)

    ref = ngram_reference(idx, emb, w1, b1, w2, b2)
    assert out.shape == (1, VOCAB)
    assert jnp.allclose(out, ref, atol=1e-4, rtol=1e-4), "mismatch vs reference"

    print("KERNEL_OK")
</pallas_src>

<mosaic_0001>
module attributes {stable_mosaic.version = 11 : i64} {
  func.func @ngram_kernel(%arg0: memref<2xi32, #tpu.memory_space<smem>>, %arg1: memref<128x128xf32, #tpu.memory_space<any>>, %arg2: memref<128x256xf32, #tpu.memory_space<vmem>>, %arg3: memref<1x128xf32, #tpu.memory_space<vmem>>, %arg4: memref<128x128xf32, #tpu.memory_space<vmem>>, %arg5: memref<1x128xf32, #tpu.memory_space<vmem>>, %arg6: memref<1x128xf32, #tpu.memory_space<vmem>>, %arg7: memref<2x128xf32, #tpu.memory_space<vmem>>, %arg8: memref<2x!tpu.dma_semaphore, #tpu.memory_space<semaphore_mem>>) attributes {dimension_semantics = [], scalar_prefetch = 0 : i64, scratch_operands = 2 : i64, tpu.core_type = #tpu.core_type<tc>} {
    %c0 = arith.constant 0 : index
    %0 = memref.load %arg0[%c0] : memref<2xi32, #tpu.memory_space<smem>>
    %c0_i32 = arith.constant 0 : i32
    %c127_i32 = arith.constant 127 : i32
    %1 = arith.maxsi %c0_i32, %0 : i32
    %2 = arith.minsi %c127_i32, %1 : i32
    %c0_i32_0 = arith.constant 0 : i32
    %c0_i32_1 = arith.constant 0 : i32
    %3 = tpu.memref_slice %arg1[%2, %c0_i32_1] : memref<128x128xf32, #tpu.memory_space<any>> -> memref<1x128xf32, #tpu.memory_space<any>>
    %c0_i32_2 = arith.constant 0 : i32
    %c0_i32_3 = arith.constant 0 : i32
    %4 = tpu.memref_slice %arg7[%c0_i32_2, %c0_i32_3] : memref<2x128xf32, #tpu.memory_space<vmem>> -> memref<1x128xf32, #tpu.memory_space<vmem>>
    %5 = tpu.memref_slice %arg8[%c0_i32_0] : memref<2x!tpu.dma_semaphore, #tpu.memory_space<semaphore_mem>> -> memref<1x!tpu.dma_semaphore, #tpu.memory_space<semaphore_mem>>
    %6 = tpu.memref_squeeze %5 : memref<1x!tpu.dma_semaphore, #tpu.memory_space<semaphore_mem>> -> memref<!tpu.dma_semaphore, #tpu.memory_space<semaphore_mem>>
    tpu.enqueue_dma source(%3 : memref<1x128xf32, #tpu.memory_space<any>>) target(%4 : memref<1x128xf32, #tpu.memory_space<vmem>>) target_semaphore(%6 : memref<!tpu.dma_semaphore, #tpu.memory_space<semaphore_mem>>)
    %c1 = arith.constant 1 : index
    %7 = memref.load %arg0[%c1] : memref<2xi32, #tpu.memory_space<smem>>
    %c0_i32_4 = arith.constant 0 : i32
    %c127_i32_5 = arith.constant 127 : i32
    %8 = arith.maxsi %c0_i32_4, %7 : i32
    %9 = arith.minsi %c127_i32_5, %8 : i32
    %c1_i32 = arith.constant 1 : i32
    %c0_i32_6 = arith.constant 0 : i32
    %10 = tpu.memref_slice %arg1[%9, %c0_i32_6] : memref<128x128xf32, #tpu.memory_space<any>> -> memref<1x128xf32, #tpu.memory_space<any>>
    %c1_i32_7 = arith.constant 1 : i32
    %c0_i32_8 = arith.constant 0 : i32
    %11 = tpu.memref_slice %arg7[%c1_i32_7, %c0_i32_8] : memref<2x128xf32, #tpu.memory_space<vmem>> -> memref<1x128xf32, #tpu.memory_space<vmem>>
    %12 = tpu.memref_slice %arg8[%c1_i32] : memref<2x!tpu.dma_semaphore, #tpu.memory_space<semaphore_mem>> -> memref<1x!tpu.dma_semaphore, #tpu.memory_space<semaphore_mem>>
    %13 = tpu.memref_squeeze %12 : memref<1x!tpu.dma_semaphore, #tpu.memory_space<semaphore_mem>> -> memref<!tpu.dma_semaphore, #tpu.memory_space<semaphore_mem>>
    tpu.enqueue_dma source(%10 : memref<1x128xf32, #tpu.memory_space<any>>) target(%11 : memref<1x128xf32, #tpu.memory_space<vmem>>) target_semaphore(%13 : memref<!tpu.dma_semaphore, #tpu.memory_space<semaphore_mem>>)
    %c0_i32_9 = arith.constant 0 : i32
    %c0_i32_10 = arith.constant 0 : i32
    %14 = tpu.memref_slice %arg1[%2, %c0_i32_10] : memref<128x128xf32, #tpu.memory_space<any>> -> memref<1x128xf32, #tpu.memory_space<any>>
    %c0_i32_11 = arith.constant 0 : i32
    %c0_i32_12 = arith.constant 0 : i32
    %15 = tpu.memref_slice %arg7[%c0_i32_11, %c0_i32_12] : memref<2x128xf32, #tpu.memory_space<vmem>> -> memref<1x128xf32, #tpu.memory_space<vmem>>
    %16 = tpu.memref_slice %arg8[%c0_i32_9] : memref<2x!tpu.dma_semaphore, #tpu.memory_space<semaphore_mem>> -> memref<1x!tpu.dma_semaphore, #tpu.memory_space<semaphore_mem>>
    %17 = tpu.memref_squeeze %16 : memref<1x!tpu.dma_semaphore, #tpu.memory_space<semaphore_mem>> -> memref<!tpu.dma_semaphore, #tpu.memory_space<semaphore_mem>>
    tpu.wait_dma2 semaphore(%17 : memref<!tpu.dma_semaphore, #tpu.memory_space<semaphore_mem>>) src(%14 : memref<1x128xf32, #tpu.memory_space<any>>) dst(%15 : memref<1x128xf32, #tpu.memory_space<vmem>>)
    %c1_i32_13 = arith.constant 1 : i32
    %c0_i32_14 = arith.constant 0 : i32
    %18 = tpu.memref_slice %arg1[%9, %c0_i32_14] : memref<128x128xf32, #tpu.memory_space<any>> -> memref<1x128xf32, #tpu.memory_space<any>>
    %c1_i32_15 = arith.constant 1 : i32
    %c0_i32_16 = arith.constant 0 : i32
    %19 = tpu.memref_slice %arg7[%c1_i32_15, %c0_i32_16] : memref<2x128xf32, #tpu.memory_space<vmem>> -> memref<1x128xf32, #tpu.memory_space<vmem>>
    %20 = tpu.memref_slice %arg8[%c1_i32_13] : memref<2x!tpu.dma_semaphore, #tpu.memory_space<semaphore_mem>> -> memref<1x!tpu.dma_semaphore, #tpu.memory_space<semaphore_mem>>
    %21 = tpu.memref_squeeze %20 : memref<1x!tpu.dma_semaphore, #tpu.memory_space<semaphore_mem>> -> memref<!tpu.dma_semaphore, #tpu.memory_space<semaphore_mem>>
    tpu.wait_dma2 semaphore(%21 : memref<!tpu.dma_semaphore, #tpu.memory_space<semaphore_mem>>) src(%18 : memref<1x128xf32, #tpu.memory_space<any>>) dst(%19 : memref<1x128xf32, #tpu.memory_space<vmem>>)
    %c0_17 = arith.constant 0 : index
    %c0_18 = arith.constant 0 : index
    %22 = vector.load %arg3[%c0_17, %c0_18] : memref<1x128xf32, #tpu.memory_space<vmem>>, vector<1x128xf32>
    %c0_19 = arith.constant 0 : index
    %c0_20 = arith.constant 0 : index
    %23 = vector.load %arg7[%c0_19, %c0_20] : memref<2x128xf32, #tpu.memory_space<vmem>>, vector<1x128xf32>
    %c0_21 = arith.constant 0 : index
    %c0_22 = arith.constant 0 : index
    %24 = vector.load %arg2[%c0_21, %c0_22] : memref<128x256xf32, #tpu.memory_space<vmem>>, vector<128x128xf32>
    %cst = arith.constant dense<0.000000e+00> : vector<1x128xf32>
    %25 = tpu.matmul %23, %24, %cst {dimension_numbers = #tpu.dot_dimension_numbers<[1], [1], [0], [0], [0, 0, 1, 0], [], []>} : vector<1x128xf32>, vector<128x128xf32>, vector<1x128xf32> -> vector<1x128xf32>
    %26 = arith.addf %22, %25 : vector<1x128xf32>
    %c1_23 = arith.constant 1 : index
    %c0_24 = arith.constant 0 : index
    %27 = vector.load %arg7[%c1_23, %c0_24] : memref<2x128xf32, #tpu.memory_space<vmem>>, vector<1x128xf32>
    %c0_25 = arith.constant 0 : index
    %c128 = arith.constant 128 : index
    %28 = vector.load %arg2[%c0_25, %c128] : memref<128x256xf32, #tpu.memory_space<vmem>>, vector<128x128xf32>
    %cst_26 = arith.constant dense<0.000000e+00> : vector<1x128xf32>
    %29 = tpu.matmul %27, %28, %cst_26 {dimension_numbers = #tpu.dot_dimension_numbers<[1], [1], [0], [0], [0, 0, 1, 0], [], []>} : vector<1x128xf32>, vector<128x128xf32>, vector<1x128xf32> -> vector<1x128xf32>
    %30 = arith.addf %26, %29 : vector<1x128xf32>
    %cst_27 = arith.constant 0.000000e+00 : f32
    %31 = vector.broadcast %cst_27 : f32 to vector<1x128xf32>
    %32 = arith.maximumf %30, %31 : vector<1x128xf32>
    %c0_28 = arith.constant 0 : index
    %c0_29 = arith.constant 0 : index
    %33 = vector.load %arg4[%c0_28, %c0_29] : memref<128x128xf32, #tpu.memory_space<vmem>>, vector<128x128xf32>
    %cst_30 = arith.constant dense<0.000000e+00> : vector<1x128xf32>
    %34 = tpu.matmul %32, %33, %cst_30 {dimension_numbers = #tpu.dot_dimension_numbers<[1], [1], [0], [0], [0, 0, 1, 0], [], []>} : vector<1x128xf32>, vector<128x128xf32>, vector<1x128xf32> -> vector<1x128xf32>
    %c0_31 = arith.constant 0 : index
    %c0_32 = arith.constant 0 : index
    %35 = vector.load %arg5[%c0_31, %c0_32] : memref<1x128xf32, #tpu.memory_space<vmem>>, vector<1x128xf32>
    %36 = arith.addf %34, %35 : vector<1x128xf32>
    %c0_33 = arith.constant 0 : index
    %c0_34 = arith.constant 0 : index
    %37 = vector.load %arg6[%c0_33, %c0_34] : memref<1x128xf32, #tpu.memory_space<vmem>>, vector<1x128xf32>
    tpu.vector_store %arg6[%c0_33, %c0_34], %36 {strides = array<i32>} : memref<1x128xf32, #tpu.memory_space<vmem>>, vector<1x128xf32>,
    return
  }
}

</mosaic_0001>

<llo_original>
// kernel: tpu_custom_call.1
$region0: #{tpu_custom_call.1}
  #allocation0 [shape = 'u32[]', space=smem, size = 0x4, offset = 0x4, fixed_abs, tag = 'smem constant byte address 0x4 - core index']
  #allocation1 [shape = 'u32[144,128]{1,0:T(1,128)}', space=vmem, size = 0x12000, scoped, tag = 'internal scratch']
  #allocation2 [shape = 'f32[2,128]{1,0:T(2,128)}', space=vmem, size = 0x400, scoped, tag = 'scratch operand']
  #allocation3 [shape = 's32[2]{0}', space=sflag, size = 0x8, scoped, tag = 'scratch operand']
  #allocation12 [shape = 's32[]', space=sflag, size = 0x4, offset = 0, fixed_abs, tag = 'sflag constant byte address 0x0 - dummy sync flag']
  #allocation13 [shape = 's32[]', space=sflag, size = 0x4, offset = 0, fixed_abs, tag = 'sflag constant byte address 0x0 - dummy sync flag']
  #allocation14 [shape = 'u32[]', space=smem, size = 0x4, offset = 0x44, fixed_abs, tag = 'smem constant byte address 0x44 - assertion arg 0']
  #allocation15 [shape = 'u32[]', space=smem, size = 0x4, offset = 0x48, fixed_abs, tag = 'smem constant byte address 0x48 - assertion arg 1']
  #allocation16 [shape = 's32[]', space=sflag, size = 0x4, offset = 0, fixed_abs, tag = 'sflag constant byte address 0x0 - dummy sync flag']
  #allocation17 [shape = 's32[]', space=sflag, size = 0x4, offset = 0, fixed_abs, tag = 'sflag constant byte address 0x0 - dummy sync flag']
  %s0 = inlined_call_operand.hbm [shape: s32[2], index: 0, kind: input, shape index: {}]
  %s1 = inlined_call_operand.hbm [shape: f32[128,128], index: 1, kind: input, shape index: {}]
  %s2 = inlined_call_operand.hbm [shape: f32[128,256], index: 2, kind: input, shape index: {}]
  %s3 = inlined_call_operand.vmem [shape: f32[1,128], index: 3, kind: input, shape index: {}]
  %s4 = inlined_call_operand.hbm [shape: f32[128,128], index: 4, kind: input, shape index: {}]
  %s5 = inlined_call_operand.vmem [shape: f32[1,128], index: 5, kind: input, shape index: {}]
  %s6 = inlined_call_operand.hbm [shape: f32[1,128], index: 6, kind: output, shape index: {}]
  %s7 = sld [smem:[#allocation0]]
  $region50: #{tpu_custom_call.1} parent=0
    _
  %s9 = ssub.s32 1, %s7
  %s10 = scalar_select 0, %s9, %s7
  $region1: #{tpu_custom_call.1} parent=0
    #allocation4 [shape = 'u8[512]{0}', space=smem, size = 0x200, scoped, tag = 'input window, operand 0, single buffered']
    #allocation5 [shape = 's32[1]{0}', space=sflag, size = 0x4, scoped, tag = 'scoped memory for tpu_custom_call.1']
    #allocation6 [shape = 's32[1]{0}', space=sflag, size = 0x4, scoped, tag = 'scoped memory for tpu_custom_call.1']
    #allocation7 [shape = 's32[1]{0}', space=sflag, size = 0x4, scoped, tag = 'scoped memory for tpu_custom_call.1']
    #allocation8 [shape = 'u8[131072]{0}', space=vmem, size = 0x20000, scoped, tag = 'input window, operand 2, single buffered']
    #allocation9 [shape = 'u8[65536]{0}', space=vmem, size = 0x10000, scoped, tag = 'input window, operand 4, single buffered']
    #allocation10 [shape = 's32[1]{0}', space=sflag, size = 0x4, scoped, tag = 'scoped memory for tpu_custom_call.1']
    #allocation11 [shape = 'u8[512]{0}', space=vmem, size = 0x400, scoped, tag = 'output window, operand 0, single buffered']
    %11 = vsyncpa [#allocation7], 0
    %12 = vsyncpa [#allocation5], 0
    %13 = vsyncpa [#allocation10], 0
    %14 = vsyncpa [#allocation6], 0
    // Predicated region
    $region2: #{tpu_custom_call.1} parent=1 // pred_check
      _
    $region3: #{tpu_custom_call.1} parent=1 // pred_check_branch
      %16 = sbr.rel (0) target = $region5
    $region4: #{tpu_custom_call.1} parent=1 // pred_region
      %s18 = ssub.s32 16, 16
      %19 = vsyncadd [#allocation7], %s18
      %22 = dma.hbm_to_smem %s0, 16, [#allocation4], [#allocation7]
    $region5: #{tpu_custom_call.1} parent=1 // pred_fallthru
      _
    // Predicated region
    $region6: #{tpu_custom_call.1} parent=1 // pred_check
      _
    $region7: #{tpu_custom_call.1} parent=1 // pred_check_branch
      %24 = sbr.rel (0) target = $region9
    $region8: #{tpu_custom_call.1} parent=1 // pred_region
      %s26 = ssub.s32 4096, 4096
      %27 = vsyncadd [#allocation5], %s26
      %s28 = sshll.u32 [#allocation8], 4
      %s29 = int_to_ptr.vmem [resolvable:$true] %s28
      %34 = dma.hbm_to_vmem [thread:$0]  %s2, 4096, %s29, [#allocation5], 256, 256, 16
    $region9: #{tpu_custom_call.1} parent=1 // pred_fallthru
      _
    // Predicated region
    $region10: #{tpu_custom_call.1} parent=1 // pred_check
      _
    $region11: #{tpu_custom_call.1} parent=1 // pred_check_branch
      %36 = sbr.rel (0) target = $region13
    $region12: #{tpu_custom_call.1} parent=1 // pred_region
      _
    $region13: #{tpu_custom_call.1} parent=1 // pred_fallthru
      _
    // Predicated region
    $region14: #{tpu_custom_call.1} parent=1 // pred_check
      _
    $region15: #{tpu_custom_call.1} parent=1 // pred_check_branch
      %38 = sbr.rel (0) target = $region17
    $region16: #{tpu_custom_call.1} parent=1 // pred_region
      %s40 = ssub.s32 2048, 2048
      %41 = vsyncadd [#allocation10], %s40
      %s42 = sshll.u32 [#allocation9], 4
      %s43 = int_to_ptr.vmem [resolvable:$true] %s42
      %48 = dma.hbm_to_vmem [thread:$0]  %s4, 2048, %s43, [#allocation10], 128, 128, 8
    $region17: #{tpu_custom_call.1} parent=1 // pred_fallthru
      _
    // Predicated region
    $region18: #{tpu_custom_call.1} parent=1 // pred_check
      _
    $region19: #{tpu_custom_call.1} parent=1 // pred_check_branch
      %50 = sbr.rel (0) target = $region21
    $region20: #{tpu_custom_call.1} parent=1 // pred_region
      _
    $region21: #{tpu_custom_call.1} parent=1 // pred_fallthru
      _
    // Predicated region
    $region22: #{tpu_custom_call.1} parent=1 // pred_check
      _
    $region23: #{tpu_custom_call.1} parent=1 // pred_check_branch
      %52 = sbr.rel (0) target = $region25
    $region24: #{tpu_custom_call.1} parent=1 // pred_region
      %53 = dma.done [#allocation7], 16
    $region25: #{tpu_custom_call.1} parent=1 // pred_fallthru
      _
    // Predicated region
    $region26: #{tpu_custom_call.1} parent=1 // pred_check
      _
    $region27: #{tpu_custom_call.1} parent=1 // pred_check_branch
      %55 = sbr.rel (0) target = $region29
    $region28: #{tpu_custom_call.1} parent=1 // pred_region
      %56 = dma.done [#allocation5], 4096
    $region29: #{tpu_custom_call.1} parent=1 // pred_fallthru
      _
    // Predicated region
    $region30: #{tpu_custom_call.1} parent=1 // pred_check
      _
    $region31: #{tpu_custom_call.1} parent=1 // pred_check_branch
      %58 = sbr.rel (0) target = $region33
    $region32: #{tpu_custom_call.1} parent=1 // pred_region
      %59 = dma.done [#allocation10], 2048
    $region33: #{tpu_custom_call.1} parent=1 // pred_fallthru
      _
    %60 = sfence
    %s61 = sld [smem:[#allocation4]]
    %p62 = scmp.gt.s32.totalorder %s61, 0
    %s63 = scalar_select %p62, %s61, 0
    %p64 = scmp.lt.s32.totalorder %s63, 127
    %s65 = scalar_select %p64, %s63, 127
    %s66 = smul.addr %s65, 16
    %s67 = scalar_lea.hbm %s1, %s66
    // Predicated region
    $region34: #{tpu_custom_call.1} parent=1 // pred_check
      _
    $region35: #{tpu_custom_call.1} parent=1 // pred_check_branch
      %69 = sbr.rel target = $region37
    $region36: #{tpu_custom_call.1} parent=1 // pred_region
      %70 = sst [smem:[#allocation14]] [#allocation13]
      %71 = sst [smem:[#allocation15]] [#allocation12]
    $region37: #{tpu_custom_call.1} parent=1 // pred_fallthru
      _
    %73 = shalt.err (0)
    %s75 = sshll.u32 [#allocation2], 4
    %s76 = int_to_ptr.vmem [resolvable:$true] %s75
    %78 = dma.hbm_to_vmem [thread:$0]  %s67, 16, %s76, [#allocation3]
    %s79 = sld [smem:[#allocation4 + $0x1]]
    %p80 = scmp.gt.s32.totalorder %s79, 0
    %s81 = scalar_select %p80, %s79, 0
    %p82 = scmp.lt.s32.totalorder %s81, 127
    %s83 = scalar_select %p82, %s81, 127
    %s84 = smul.addr %s83, 16
    %s85 = scalar_lea.hbm %s1, %s84
    %s86 = scalar_lea.vmem [#allocation2], 1
    %s87 = scalar_lea.sflag [#allocation3], 1
    // Predicated region
    $region38: #{tpu_custom_call.1} parent=1 // pred_check
      _
    $region39: #{tpu_custom_call.1} parent=1 // pred_check_branch
      %89 = sbr.rel target = $region41
    $region40: #{tpu_custom_call.1} parent=1 // pred_region
      %90 = sst [smem:[#allocation14]] [#allocation17]
      %91 = sst [smem:[#allocation15]] [#allocation16]
    $region41: #{tpu_custom_call.1} parent=1 // pred_fallthru
      _
    %93 = shalt.err (0)
    %s95 = sshll.u32 %s86, 4
    %s96 = int_to_ptr.vmem [resolvable:$true] %s95
    %98 = dma.hbm_to_vmem [thread:$0]  %s85, 16, %s96, %s87
    %s99 = smul.u32 1, 1
    %s100 = sshll.u32 %s99, 4
    %101 = dma.done [#allocation3], %s100
    %s102 = sshll.u32 %s99, 4
    %103 = dma.done %s87, %s102
    %v104 = vld [vmem:[%s3] sm:$0x1]
    %v105 = vld [vmem:[#allocation2] sm:$0x1]
    %v106 = vld [vmem:[#allocation8] sm:$0xff]
    %v107 = vld [vmem:[#allocation8 + $0x10] sm:$0xff]
    %v108 = vld [vmem:[#allocation8 + $0x20] sm:$0xff]
    %v109 = vld [vmem:[#allocation8 + $0x30] sm:$0xff]
    %v110 = vld [vmem:[#allocation8 + $0x40] sm:$0xff]
    %v111 = vld [vmem:[#allocation8 + $0x50] sm:$0xff]
    %v112 = vld [vmem:[#allocation8 + $0x60] sm:$0xff]
    %v113 = vld [vmem:[#allocation8 + $0x70] sm:$0xff]
    %v114 = vld [vmem:[#allocation8 + $0x80] sm:$0xff]
    %v115 = vld [vmem:[#allocation8 + $0x90] sm:$0xff]
    %v116 = vld [vmem:[#allocation8 + $0xa0] sm:$0xff]
    %v117 = vld [vmem:[#allocation8 + $0xb0] sm:$0xff]
    %v118 = vld [vmem:[#allocation8 + $0xc0] sm:$0xff]
    %v119 = vld [vmem:[#allocation8 + $0xd0] sm:$0xff]
    %v120 = vld [vmem:[#allocation8 + $0xe0] sm:$0xff]
    %v121 = vld [vmem:[#allocation8 + $0xf0] sm:$0xff]
    %122 = vmatprep.subr.mxu0 0.0
    %123 = vmatpush1.xpose.msra.mxu0 %v106
    %124 = vmatprep.subr.mxu0 0.0
    %125 = vmatpush1.xpose.msra.mxu0 %v107
    %126 = vmatprep.subr.mxu0 0.0
    %127 = vmatpush1.xpose.msra.mxu0 %v108
    %128 = vmatprep.subr.mxu0 0.0
    %129 = vmatpush1.xpose.msra.mxu0 %v109
    %130 = vmatprep.subr.mxu0 0.0
    %131 = vmatpush1.xpose.msra.mxu0 %v110
    %132 = vmatprep.subr.mxu0 0.0
    %133 = vmatpush1.xpose.msra.mxu0 %v111
    %134 = vmatprep.subr.mxu0 0.0
    %135 = vmatpush1.xpose.msra.mxu0 %v112
    %136 = vmatprep.subr.mxu0 0.0
    %137 = vmatpush1.xpose.msra.mxu0 %v113
    %138 = vmatprep.subr.mxu0 0.0
    %139 = vmatpush1.xpose.msra.mxu0 %v114
    %140 = vmatprep.subr.mxu0 0.0
    %141 = vmatpush1.xpose.msra.mxu0 %v115
    %142 = vmatprep.subr.mxu0 0.0
    %143 = vmatpush1.xpose.msra.mxu0 %v116
    %144 = vmatprep.subr.mxu0 0.0
    %145 = vmatpush1.xpose.msra.mxu0 %v117
    %146 = vmatprep.subr.mxu0 0.0
    %147 = vmatpush1.xpose.msra.mxu0 %v118
    %148 = vmatprep.subr.mxu0 0.0
    %149 = vmatpush1.xpose.msra.mxu0 %v119
    %150 = vmatprep.subr.mxu0 0.0
    %151 = vmatpush1.xpose.msra.mxu0 %v120
    %152 = vmatprep.subr.mxu0 0.0
    %153 = vmatpush1.xpose.msra.mxu0 %v121
    %154 = vmatprep.subr.mxu0 0.0
    %155 = vmatpush1.xpose.msra.mxu0 0.0
    %156 = vmatprep.subr.mxu0 0.0
    %157 = vmatpush1.xpose.msra.mxu0 0.0
    %158 = vmatprep.subr.mxu0 0.0
    %159 = vmatpush1.xpose.msra.mxu0 0.0
    %160 = vmatprep.subr.mxu0 0.0
    %161 = vmatpush1.xpose.msra.mxu0 0.0
    %162 = vmatprep.subr.mxu0 0.0
    %163 = vmatpush1.xpose.msra.mxu0 0.0
    %164 = vmatprep.subr.mxu0 0.0
    %165 = vmatpush1.xpose.msra.mxu0 0.0
    %166 = vmatprep.subr.mxu0 0.0
    %167 = vmatpush1.xpose.msra.mxu0 0.0
    %168 = vmatprep.subr.mxu0 0.0
    %169 = vmatpush1.xpose.msra.mxu0 0.0
    %170 = vmatprep.subr.mxu0 0.0
    %171 = vmatpush1.xpose.msra.mxu0 0.0
    %172 = vmatprep.subr.mxu0 0.0
    %173 = vmatpush1.xpose.msra.mxu0 0.0
    %174 = vmatprep.subr.mxu0 0.0
    %175 = vmatpush1.xpose.msra.mxu0 0.0
    %176 = vmatprep.subr.mxu0 0.0
    %177 = vmatpush1.xpose.msra.mxu0 0.0
    %178 = vmatprep.subr.mxu0 0.0
    %179 = vmatpush1.xpose.msra.mxu0 0.0
    %180 = vmatprep.subr.mxu0 0.0
    %181 = vmatpush1.xpose.msra.mxu0 0.0
    %182 = vmatprep.subr.mxu0 0.0
    %183 = vmatpush1.xpose.msra.mxu0 0.0
    %184 = vmatprep.subr.mxu0 0.0
    %185 = vmatpush1.xpose.msra.mxu0 0.0
    %186 = vmatprep.mubr.f32.mxu0 0.0
    %187 = vmatmul.mubr.f32.gmra.mrb[0].mxu0 %v105
    %v188 = vpop.f32.mrb[0].mxu0
    %v189 = vadd.f32 0.0, %v188
    %v190 = vpop.f32.mrb[0].mxu0
    %191 = vdwg.mxu0
    %v192 = vadd.f32 %v104, %v189
    %v193 = vld [vmem:[#allocation2 + $0x1] sm:$0x1]
    %v194 = vld [vmem:[#allocation8 + $0x8] sm:$0xff]
    %v195 = vld [vmem:[#allocation8 + $0x18] sm:$0xff]
    %v196 = vld [vmem:[#allocation8 + $0x28] sm:$0xff]
    %v197 = vld [vmem:[#allocation8 + $0x38] sm:$0xff]
    %v198 = vld [vmem:[#allocation8 + $0x48] sm:$0xff]
    %v199 = vld [vmem:[#allocation8 + $0x58] sm:$0xff]
    %v200 = vld [vmem:[#allocation8 + $0x68] sm:$0xff]
    %v201 = vld [vmem:[#allocation8 + $0x78] sm:$0xff]
    %v202 = vld [vmem:[#allocation8 + $0x88] sm:$0xff]
    %v203 = vld [vmem:[#allocation8 + $0x98] sm:$0xff]
    %v204 = vld [vmem:[#allocation8 + $0xa8] sm:$0xff]
    %v205 = vld [vmem:[#allocation8 + $0xb8] sm:$0xff]
    %v206 = vld [vmem:[#allocation8 + $0xc8] sm:$0xff]
    %v207 = vld [vmem:[#allocation8 + $0xd8] sm:$0xff]
    %v208 = vld [vmem:[#allocation8 + $0xe8] sm:$0xff]
    %v209 = vld [vmem:[#allocation8 + $0xf8] sm:$0xff]
    %210 = vmatprep.subr.mxu0 0.0
    %211 = vmatpush1.xpose.msra.mxu0 %v194
    %212 = vmatprep.subr.mxu0 0.0
    %213 = vmatpush1.xpose.msra.mxu0 %v195
    %214 = vmatprep.subr.mxu0 0.0
    %215 = vmatpush1.xpose.msra.mxu0 %v196
    %216 = vmatprep.subr.mxu0 0.0
    %217 = vmatpush1.xpose.msra.mxu0 %v197
    %218 = vmatprep.subr.mxu0 0.0
    %219 = vmatpush1.xpose.msra.mxu0 %v198
    %220 = vmatprep.subr.mxu0 0.0
    %221 = vmatpush1.xpose.msra.mxu0 %v199
    %222 = vmatprep.subr.mxu0 0.0
    %223 = vmatpush1.xpose.msra.mxu0 %v200
    %224 = vmatprep.subr.mxu0 0.0
    %225 = vmatpush1.xpose.msra.mxu0 %v201
    %226 = vmatprep.subr.mxu0 0.0
    %227 = vmatpush1.xpose.msra.mxu0 %v202
    %228 = vmatprep.subr.mxu0 0.0
    %229 = vmatpush1.xpose.msra.mxu0 %v203
    %230 = vmatprep.subr.mxu0 0.0
    %231 = vmatpush1.xpose.msra.mxu0 %v204
    %232 = vmatprep.subr.mxu0 0.0
    %233 = vmatpush1.xpose.msra.mxu0 %v205
    %234 = vmatprep.subr.mxu0 0.0
    %235 = vmatpush1.xpose.msra.mxu0 %v206
    %236 = vmatprep.subr.mxu0 0.0
    %237 = vmatpush1.xpose.msra.mxu0 %v207
    %238 = vmatprep.subr.mxu0 0.0
    %239 = vmatpush1.xpose.msra.mxu0 %v208
    %240 = vmatprep.subr.mxu0 0.0
    %241 = vmatpush1.xpose.msra.mxu0 %v209
    %242 = vmatprep.subr.mxu0 0.0
    %243 = vmatpush1.xpose.msra.mxu0 0.0
    %244 = vmatprep.subr.mxu0 0.0
    %245 = vmatpush1.xpose.msra.mxu0 0.0
    %246 = vmatprep.subr.mxu0 0.0
    %247 = vmatpush1.xpose.msra.mxu0 0.0
    %248 = vmatprep.subr.mxu0 0.0
    %249 = vmatpush1.xpose.msra.mxu0 0.0
    %250 = vmatprep.subr.mxu0 0.0
    %251 = vmatpush1.xpose.msra.mxu0 0.0
    %252 = vmatprep.subr.mxu0 0.0
    %253 = vmatpush1.xpose.msra.mxu0 0.0
    %254 = vmatprep.subr.mxu0 0.0
    %255 = vmatpush1.xpose.msra.mxu0 0.0
    %256 = vmatprep.subr.mxu0 0.0
    %257 = vmatpush1.xpose.msra.mxu0 0.0
    %258 = vmatprep.subr.mxu0 0.0
    %259 = vmatpush1.xpose.msra.mxu0 0.0
    %260 = vmatprep.subr.mxu0 0.0
    %261 = vmatpush1.xpose.msra.mxu0 0.0
    %262 = vmatprep.subr.mxu0 0.0
    %263 = vmatpush1.xpose.msra.mxu0 0.0
    %264 = vmatprep.subr.mxu0 0.0
    %265 = vmatpush1.xpose.msra.mxu0 0.0
    %266 = vmatprep.subr.mxu0 0.0
    %267 = vmatpush1.xpose.msra.mxu0 0.0
    %268 = vmatprep.subr.mxu0 0.0
    %269 = vmatpush1.xpose.msra.mxu0 0.0
    %270 = vmatprep.subr.mxu0 0.0
    %271 = vmatpush1.xpose.msra.mxu0 0.0
    %272 = vmatprep.subr.mxu0 0.0
    %273 = vmatpush1.xpose.msra.mxu0 0.0
    %274 = vmatprep.mubr.f32.mxu0 0.0
    %275 = vmatmul.mubr.f32.gmra.mrb[0].mxu0 %v193
    %v276 = vpop.f32.mrb[0].mxu0
    %v277 = vadd.f32 0.0, %v276
    %v278 = vpop.f32.mrb[0].mxu0
    %279 = vdwg.mxu0
    %v280 = vadd.f32 %v192, %v277
    %v281 = vmax.f32 %v280, 0.0
    %v282 = vld [vmem:[#allocation9] sm:$0xff]
    %v283 = vld [vmem:[#allocation9 + $0x8] sm:$0xff]
    %v284 = vld [vmem:[#allocation9 + $0x10] sm:$0xff]
    %v285 = vld [vmem:[#allocation9 + $0x18] sm:$0xff]
    %v286 = vld [vmem:[#allocation9 + $0x20] sm:$0xff]
    %v287 = vld [vmem:[#allocation9 + $0x28] sm:$0xff]
    %v288 = vld [vmem:[#allocation9 + $0x30] sm:$0xff]
    %v289 = vld [vmem:[#allocation9 + $0x38] sm:$0xff]
    %v290 = vld [vmem:[#allocation9 + $0x40] sm:$0xff]
    %v291 = vld [vmem:[#allocation9 + $0x48] sm:$0xff]
    %v292 = vld [vmem:[#allocation9 + $0x50] sm:$0xff]
    %v293 = vld [vmem:[#allocation9 + $0x58] sm:$0xff]
    %v294 = vld [vmem:[#allocation9 + $0x60] sm:$0xff]
    %v295 = vld [vmem:[#allocation9 + $0x68] sm:$0xff]
    %v296 = vld [vmem:[#allocation9 + $0x70] sm:$0xff]
    %v297 = vld [vmem:[#allocation9 + $0x78] sm:$0xff]
    %v298 = vld [vmem:[%s5] sm:$0x1]
    %299 = vmatprep.subr.mxu0 0.0
    %300 = vmatpush1.xpose.msra.mxu0 %v282
    %301 = vmatprep.subr.mxu0 0.0
    %302 = vmatpush1.xpose.msra.mxu0 %v283
    %303 = vmatprep.subr.mxu0 0.0
    %304 = vmatpush1.xpose.msra.mxu0 %v284
    %305 = vmatprep.subr.mxu0 0.0
    %306 = vmatpush1.xpose.msra.mxu0 %v285
    %307 = vmatprep.subr.mxu0 0.0
    %308 = vmatpush1.xpose.msra.mxu0 %v286
    %309 = vmatprep.subr.mxu0 0.0
    %310 = vmatpush1.xpose.msra.mxu0 %v287
    %311 = vmatprep.subr.mxu0 0.0
    %312 = vmatpush1.xpose.msra.mxu0 %v288
    %313 = vmatprep.subr.mxu0 0.0
    %314 = vmatpush1.xpose.msra.mxu0 %v289
    %315 = vmatprep.subr.mxu0 0.0
    %316 = vmatpush1.xpose.msra.mxu0 %v290
    %317 = vmatprep.subr.mxu0 0.0
    %318 = vmatpush1.xpose.msra.mxu0 %v291
    %319 = vmatprep.subr.mxu0 0.0
    %320 = vmatpush1.xpose.msra.mxu0 %v292
    %321 = vmatprep.subr.mxu0 0.0
    %322 = vmatpush1.xpose.msra.mxu0 %v293
    %323 = vmatprep.subr.mxu0 0.0
    %324 = vmatpush1.xpose.msra.mxu0 %v294
    %325 = vmatprep.subr.mxu0 0.0
    %326 = vmatpush1.xpose.msra.mxu0 %v295
    %327 = vmatprep.subr.mxu0 0.0
    %328 = vmatpush1.xpose.msra.mxu0 %v296
    %329 = vmatprep.subr.mxu0 0.0
    %330 = vmatpush1.xpose.msra.mxu0 %v297
    %331 = vmatprep.subr.mxu0 0.0
    %332 = vmatpush1.xpose.msra.mxu0 0.0
    %333 = vmatprep.subr.mxu0 0.0
    %334 = vmatpush1.xpose.msra.mxu0 0.0
    %335 = vmatprep.subr.mxu0 0.0
    %336 = vmatpush1.xpose.msra.mxu0 0.0
    %337 = vmatprep.subr.mxu0 0.0
    %338 = vmatpush1.xpose.msra.mxu0 0.0
    %339 = vmatprep.subr.mxu0 0.0
    %340 = vmatpush1.xpose.msra.mxu0 0.0
    %341 = vmatprep.subr.mxu0 0.0
    %342 = vmatpush1.xpose.msra.mxu0 0.0
    %343 = vmatprep.subr.mxu0 0.0
    %344 = vmatpush1.xpose.msra.mxu0 0.0
    %345 = vmatprep.subr.mxu0 0.0
    %346 = vmatpush1.xpose.msra.mxu0 0.0
    %347 = vmatprep.subr.mxu0 0.0
    %348 = vmatpush1.xpose.msra.mxu0 0.0
    %349 = vmatprep.subr.mxu0 0.0
    %350 = vmatpush1.xpose.msra.mxu0 0.0
    %351 = vmatprep.subr.mxu0 0.0
    %352 = vmatpush1.xpose.msra.mxu0 0.0
    %353 = vmatprep.subr.mxu0 0.0
    %354 = vmatpush1.xpose.msra.mxu0 0.0
    %355 = vmatprep.subr.mxu0 0.0
    %356 = vmatpush1.xpose.msra.mxu0 0.0
    %357 = vmatprep.subr.mxu0 0.0
    %358 = vmatpush1.xpose.msra.mxu0 0.0
    %359 = vmatprep.subr.mxu0 0.0
    %360 = vmatpush1.xpose.msra.mxu0 0.0
    %361 = vmatprep.subr.mxu0 0.0
    %362 = vmatpush1.xpose.msra.mxu0 0.0
    %363 = vmatprep.mubr.f32.mxu0 0.0
    %364 = vmatmul.mubr.f32.gmra.mrb[0].mxu0 %v281
    %v365 = vpop.f32.mrb[0].mxu0
    %v366 = vadd.f32 %v298, %v365
    %v367 = vpop.f32.mrb[0].mxu0
    %368 = vdwg.mxu0
    %369 = vst [vmem:[#allocation11] sm:$0x1] %v366
    // Predicated region
    $region42: #{tpu_custom_call.1} parent=1 // pred_check
      _
    $region43: #{tpu_custom_call.1} parent=1 // pred_check_branch
      %371 = sbr.rel (0) target = $region45
    $region44: #{tpu_custom_call.1} parent=1 // pred_region
      %s373 = ssub.s32 16, 16
      %374 = vsyncadd [#allocation6], %s373
      %s376 = sshll.u32 [#allocation11], 4
      %s377 = int_to_ptr.vmem [resolvable:$true] %s376
      %379 = dma.vmem_to_hbm [thread:$0]  %s377, 16, %s6, [#allocation6]
    $region45: #{tpu_custom_call.1} parent=1 // pred_fallthru
      _
    // Predicated region
    $region46: #{tpu_custom_call.1} parent=1 // pred_check
      _
    $region47: #{tpu_custom_call.1} parent=1 // pred_check_branch
      %381 = sbr.rel (0) target = $region49
    $region48: #{tpu_custom_call.1} parent=1 // pred_region
      %382 = dma.done [#allocation6], 16
    $region49: #{tpu_custom_call.1} parent=1 // pred_fallthru
      _
    %383 = vsyncpa [#allocation5], 1
    %384 = vsyncpa [#allocation10], 1
    %385 = vsyncpa [#allocation6], 1
    %386 = vsyncpa [#allocation7], 1
  %387 = vsyncmov [#allocation3]
  %s388 = vpop.sfrf %387
  %p389 = scmp.eq.s32.totalorder %s388, 0
  %p390 = pneg %p389
  %392 = shalt.err (%p390)
  %s393 = scalar_lea.sflag [#allocation3], 1
  %394 = vsyncmov %s393
  %s395 = vpop.sfrf %394
  %p396 = scmp.eq.s32.totalorder %s395, 0
  %p397 = pneg %p396
  %399 = shalt.err (%p397)

</llo_original>
